<compile_context>
chip_gen: v7x
topology: tpu7x:2x2x1
jax: 0.10.0
libtpu: 0.0.40
codegen_flags: <defaults>
</compile_context>

<pallas_src>
import functools

import jax
import jax.numpy as jnp
from jax.experimental import pallas as pl
from jax.experimental.pallas import tpu as pltpu


def _round_up(x, m):
    return ((x + m - 1) // m) * m


def _clip_classifier_kernel(x_ref, wproj_ref, textT_ref, avg_ref,
                            idx_ref, val_ref, *, num_templates):
    x = x_ref[...]                                    # (TB, H_pad)  matmul dtype
    w = wproj_ref[...]                                # (H_pad, P_pad) matmul dtype (= W_proj^T)
    t = textT_ref[...]                                # (P_pad, NT_pad) matmul dtype (= text^T * logit_scale)
    avg = avg_ref[...]                                # (NT_pad, C_pad) f32 block-mean matrix

    # visual_projection (Linear, no bias) -- MXU, f32 accumulation.
    feats = jnp.dot(x, w, preferred_element_type=jnp.float32)            # (TB, P_pad) f32

    # L2-normalization folded into a per-row scale (rsqrt -> EUP slot).
    # (padded feature columns are exactly zero, so sumsq is unaffected;
    #  the max() guard only protects all-zero / padded batch rows.)
    sumsq = jnp.sum(feats * feats, axis=-1, keepdims=True)               # (TB, 1)
    inv_norm = jax.lax.rsqrt(jnp.maximum(sumsq, 1e-30))                  # (TB, 1)

    # logits = (embeds @ text^T) * logit_scale == dot(feats, t_scaled) * inv_norm
    logits = jnp.dot(feats.astype(t.dtype), t,
                     preferred_element_type=jnp.float32) * inv_norm      # (TB, NT_pad)

    # mask padded template columns out of the softmax
    col = jax.lax.broadcasted_iota(jnp.int32, logits.shape, 1)
    logits = jnp.where(col < num_templates, logits, -1e30)

    # softmax with deferred denominator (divide only at (TB, C_pad) granularity)
    m = jnp.max(logits, axis=-1, keepdims=True)
    e = jnp.exp(logits - m)                                              # (TB, NT_pad) f32
    denom = jnp.sum(e, axis=-1, keepdims=True)                           # (TB, 1)
    pbc = jnp.dot(e, avg, preferred_element_type=jnp.float32)            # (TB, C_pad) unnormalized
    pbc = pbc * pl.reciprocal(denom)                                     # exact recip (keeps f32 accuracy)

    # max / first-argmax over classes.  Padded class columns are exactly 0 and
    # real class means are strictly positive, so padding never wins.
    max_vals = jnp.max(pbc, axis=-1, keepdims=True)                      # (TB, 1)
    ids = jax.lax.broadcasted_iota(jnp.int32, pbc.shape, 1)
    max_idx = jnp.min(jnp.where(pbc == max_vals, ids, pbc.shape[-1]),
                      axis=-1, keepdims=True)                            # (TB, 1)

    # lane-dense stores: broadcast across the 128-lane output slab (unmasked vst)
    val_ref[...] = jnp.broadcast_to(max_vals, val_ref.shape).astype(jnp.float32)
    idx_ref[...] = jnp.broadcast_to(max_idx, idx_ref.shape).astype(jnp.int32)


def prepare_clip_classifier_params(w_proj, text_embeds, logit_scale,
                                   num_classes, templates_per_class,
                                   matmul_dtype=jnp.bfloat16):
    """One-time, out-of-the-hot-path data prep.

    w_proj:       (P, H) torch-style Linear weight of visual_projection.
    text_embeds:  (NT, P) already L2-normalized text embeddings.
    Returns padded, pre-transposed, dtype-cast arrays + static metadata.
    """
    P, H = w_proj.shape
    NT = text_embeds.shape[0]
    C, T = num_classes, templates_per_class
    assert NT == C * T

    H_pad = _round_up(H, 128)
    P_pad = _round_up(P, 128)
    NT_pad = _round_up(NT, 128)
    C_pad = _round_up(C, 128)

    w_t = jnp.zeros((H_pad, P_pad), jnp.float32).at[:H, :P].set(
        jnp.asarray(w_proj, jnp.float32).T)
    # fold logit_scale into the text matrix offline
    text_t = jnp.zeros((P_pad, NT_pad), jnp.float32).at[:P, :NT].set(
        jnp.asarray(text_embeds, jnp.float32).T * float(logit_scale))
    # block-averaging matrix: (NT_pad, C_pad), entry 1/T where template j belongs to class c
    blk = jnp.repeat(jnp.eye(C, dtype=jnp.float32) / float(T), T, axis=0)  # (NT, C)
    avg = jnp.zeros((NT_pad, C_pad), jnp.float32).at[:NT, :C].set(blk)

    return dict(
        w_t=w_t.astype(matmul_dtype),
        text_t=text_t.astype(matmul_dtype),
        avg=avg,
        H=H, H_pad=H_pad, NT=NT, C=C,
        matmul_dtype=matmul_dtype,
    )


def clip_classifier_forward(img_latent, params, *, block_b=256):
    """img_latent: (B, H).  Returns (max_idx (B,) int32, max_vals (B,) f32)."""
    x = jnp.asarray(img_latent, jnp.float32)
    B, H = x.shape
    assert H == params["H"]

    w_t, text_t, avg = params["w_t"], params["text_t"], params["avg"]
    mm_dtype = params["matmul_dtype"]
    H_pad = params["H_pad"]
    NT, C = params["NT"], params["C"]
    P_pad = w_t.shape[1]
    NT_pad = text_t.shape[1]
    C_pad = avg.shape[1]

    # batch tile: multiple of 8 sublanes; pad B so the grid divides evenly
    TB = _round_up(min(block_b, _round_up(B, 8)), 8)
    B_pad = _round_up(B, TB)
    x_p = jnp.zeros((B_pad, H_pad), mm_dtype).at[:B, :H].set(x.astype(mm_dtype))

    grid = (B_pad // TB,)
    kernel = functools.partial(_clip_classifier_kernel, num_templates=NT)

    flops = (2 * B_pad * H_pad * P_pad
             + 2 * B_pad * P_pad * NT_pad
             + 2 * B_pad * NT_pad * C_pad)
    bytes_accessed = (x_p.size * x_p.dtype.itemsize
                      + w_t.size * w_t.dtype.itemsize
                      + text_t.size * text_t.dtype.itemsize
                      + avg.size * 4
                      + B_pad * 128 * (4 + 4))
    cost = pl.CostEstimate(flops=flops,
                           transcendentals=B_pad * NT_pad,
                           bytes_accessed=bytes_accessed)

    # NOTE: weight/text/avg specs use a constant index_map, so they stay resident
    # across the batch grid (loaded once; at huge text tables consider
    # pipeline_mode=pl.Buffered(1) / larger vmem_limit_bytes on v7x).
    idx, val = pl.pallas_call(
        kernel,
        grid=grid,
        in_specs=[
            pl.BlockSpec((TB, H_pad), lambda i: (i, 0)),       # streamed activations
            pl.BlockSpec((H_pad, P_pad), lambda i: (0, 0)),    # resident W_proj^T
            pl.BlockSpec((P_pad, NT_pad), lambda i: (0, 0)),   # resident text^T * scale
            pl.BlockSpec((NT_pad, C_pad), lambda i: (0, 0)),   # resident averaging matrix
        ],
        out_specs=(
            pl.BlockSpec((TB, 128), lambda i: (i, 0)),
            pl.BlockSpec((TB, 128), lambda i: (i, 0)),
        ),
        out_shape=(
            jax.ShapeDtypeStruct((B_pad, 128), jnp.int32),
            jax.ShapeDtypeStruct((B_pad, 128), jnp.float32),
        ),
        compiler_params=pltpu.CompilerParams(
            dimension_semantics=("parallel",),
            vmem_limit_bytes=64 * 1024 * 1024),
        cost_estimate=cost,
    )(x_p, w_t, text_t, avg)

    return idx[:B, 0], val[:B, 0]


# ----------------------------------------------------------------------------
# pure-JAX references for validation
# ----------------------------------------------------------------------------
def _reference_torch_semantics(x, w_proj, text_embeds, C, T, logit_scale):
    """Exact transcription of CLIPClassifier.forward (f32)."""
    feats = x @ w_proj.T
    embeds = feats / jnp.sqrt(jnp.sum(feats * feats, -1, keepdims=True))
    logits = embeds @ text_embeds.T * logit_scale
    probs = jax.nn.softmax(logits, axis=1)
    pbc = probs.reshape(x.shape[0], C, T).mean(-1)
    return jnp.argmax(pbc, 1).astype(jnp.int32), jnp.max(pbc, 1), pbc


def _reference_from_params(x, params):
    """Pure-JAX reference mirroring the kernel's numerics (same casts / folds)."""
    mm = params["matmul_dtype"]
    H, NT, C = params["H"], params["NT"], params["C"]
    xq = jnp.asarray(x, jnp.float32).astype(mm)
    w = params["w_t"][:H, :]
    t = params["text_t"]
    avg = params["avg"]
    feats = jnp.dot(xq, w, preferred_element_type=jnp.float32)
    inv = jax.lax.rsqrt(jnp.maximum(jnp.sum(feats * feats, -1, keepdims=True), 1e-30))
    logits = jnp.dot(feats.astype(mm), t, preferred_element_type=jnp.float32) * inv
    logits = jnp.where(jnp.arange(logits.shape[-1]) < NT, logits, -1e30)
    m = jnp.max(logits, -1, keepdims=True)
    e = jnp.exp(logits - m)
    pbc = jnp.dot(e, avg, preferred_element_type=jnp.float32) / jnp.sum(e, -1, keepdims=True)
    pbc = pbc[:, :C]
    return jnp.argmax(pbc, 1).astype(jnp.int32), jnp.max(pbc, 1), pbc


def _check(idx, val, ref_idx, ref_val, ref_pbc, atol):
    assert bool(jnp.allclose(val, ref_val, atol=atol)), (val, ref_val)
    # index must match, except on numerical ties (torch.max "first max" semantics
    # up to fp noise)
    chosen = jnp.take_along_axis(ref_pbc, idx[:, None], axis=1)[:, 0]
    ok = (idx == ref_idx) | (jnp.abs(chosen - ref_val) <= atol)
    assert bool(jnp.all(ok)), (idx, ref_idx)


if __name__ == "__main__":
    # Small, deterministic synthetic setup (no checkpoint loading).
    B = 2          # batch
    H = 32         # vision hidden size fed to visual_projection
    P = 64         # projection dim
    C = 8          # classes: neutral/porn/blood/gun/gesture/knife/alcohol/cigarette
    T = 2          # templates per class
    NT = C * T
    logit_scale = float(jnp.exp(jnp.log(1.0 / 0.07)))   # CLIP logit_scale.exp()

    key = jax.random.PRNGKey(0)
    k1, k2, k3, k4 = jax.random.split(key, 4)

    img_latent = jax.random.normal(k1, (B, H), jnp.float32)
    w_proj = jax.random.normal(k2, (P, H), jnp.float32) * 0.02   # Linear(H->P, bias=False) weight
    text_feats = jax.random.normal(k3, (NT, P), jnp.float32)
    text_embeds = text_feats / jnp.sqrt(
        jnp.sum(text_feats * text_feats, axis=-1, keepdims=True))

    # 1) exact-semantics check: f32 matmuls vs torch-style f32 reference
    params_f32 = prepare_clip_classifier_params(
        w_proj, text_embeds, logit_scale, C, T, matmul_dtype=jnp.float32)
    idx32, val32 = clip_classifier_forward(img_latent, params_f32)
    jax.block_until_ready((idx32, val32))
    r_idx, r_val, r_pbc = _reference_torch_semantics(
        img_latent, w_proj, text_embeds, C, T, logit_scale)
    _check(idx32, val32, r_idx, r_val, r_pbc, atol=1e-4)

    # 2) performance config: bf16 matmul operands, f32 elementwise math
    params_bf16 = prepare_clip_classifier_params(
        w_proj, text_embeds, logit_scale, C, T)            # default bf16
    idx_bf, val_bf = clip_classifier_forward(img_latent, params_bf16)
    jax.block_until_ready((idx_bf, val_bf))
    m_idx, m_val, m_pbc = _reference_from_params(img_latent, params_bf16)
    _check(idx_bf, val_bf, m_idx, m_val, m_pbc, atol=1e-4)

    # 3) multi-step batch grid (exercises tiling / pipelining path)
    B2 = 20
    x2 = jax.random.normal(k4, (B2, H), jnp.float32)
    idx2, val2 = clip_classifier_forward(x2, params_bf16, block_b=8)
    jax.block_until_ready((idx2, val2))
    m_idx2, m_val2, m_pbc2 = _reference_from_params(x2, params_bf16)
    _check(idx2, val2, m_idx2, m_val2, m_pbc2, atol=1e-4)

    print("KERNEL_OK")
</pallas_src>

<mosaic_0001>
module attributes {stable_mosaic.version = 11 : i64} {
  func.func @_clip_classifier_kernel(%arg0: i32, %arg1: memref<8x128xf32, #tpu.memory_space<vmem>>, %arg2: memref<128x128xf32, #tpu.memory_space<vmem>>, %arg3: memref<128x128xf32, #tpu.memory_space<vmem>>, %arg4: memref<128x128xf32, #tpu.memory_space<vmem>>, %arg5: memref<8x128xi32, #tpu.memory_space<vmem>>, %arg6: memref<8x128xf32, #tpu.memory_space<vmem>>) attributes {dimension_semantics = [#tpu.dimension_semantics<parallel>], iteration_bounds = array<i64: 1>, scalar_prefetch = 0 : i64, scratch_operands = 0 : i64, tpu.core_type = #tpu.core_type<tc>, window_params = [{transform_indices = @transform_0, window_bounds = array<i64: 8, 128>}, {pipeline_mode = #tpu.pipeline_mode<synchronous>, transform_indices = @transform_1, window_bounds = array<i64: 128, 128>}, {pipeline_mode = #tpu.pipeline_mode<synchronous>, transform_indices = @transform_2, window_bounds = array<i64: 128, 128>}, {pipeline_mode = #tpu.pipeline_mode<synchronous>, transform_indices = @transform_3, window_bounds = array<i64: 128, 128>}, {transform_indices = @transform_4, window_bounds = array<i64: 8, 128>}, {transform_indices = @transform_5, window_bounds = array<i64: 8, 128>}]} {
    %c0 = arith.constant 0 : index
    %c0_0 = arith.constant 0 : index
    %0 = vector.load %arg1[%c0, %c0_0] : memref<8x128xf32, #tpu.memory_space<vmem>>, vector<8x128xf32>
    %c0_1 = arith.constant 0 : index
    %c0_2 = arith.constant 0 : index
    %1 = vector.load %arg2[%c0_1, %c0_2] : memref<128x128xf32, #tpu.memory_space<vmem>>, vector<128x128xf32>
    %c0_3 = arith.constant 0 : index
    %c0_4 = arith.constant 0 : index
    %2 = vector.load %arg3[%c0_3, %c0_4] : memref<128x128xf32, #tpu.memory_space<vmem>>, vector<128x128xf32>
    %c0_5 = arith.constant 0 : index
    %c0_6 = arith.constant 0 : index
    %3 = vector.load %arg4[%c0_5, %c0_6] : memref<128x128xf32, #tpu.memory_space<vmem>>, vector<128x128xf32>
    %cst = arith.constant dense<0.000000e+00> : vector<8x128xf32>
    %4 = tpu.matmul %0, %1, %cst {dimension_numbers = #tpu.dot_dimension_numbers<[1], [0], [0], [1], [0, 0, 1, 1], [], []>} : vector<8x128xf32>, vector<128x128xf32>, vector<8x128xf32> -> vector<8x128xf32>
    %5 = arith.mulf %4, %4 : vector<8x128xf32>
    %cst_7 = arith.constant dense<0.000000e+00> : vector<8xf32>
    %6 = vector.multi_reduction <add>, %5, %cst_7 [1] : vector<8x128xf32> to vector<8xf32>
    %7 = vector.shape_cast %6 : vector<8xf32> to vector<8x1xf32>
    %cst_8 = arith.constant 1.000000e-30 : f32
    %8 = vector.broadcast %cst_8 : f32 to vector<8x1xf32>
    %9 = arith.maximumf %7, %8 : vector<8x1xf32>
    %10 = math.rsqrt %9 : vector<8x1xf32>
    %cst_9 = arith.constant dense<0.000000e+00> : vector<8x128xf32>
    %11 = tpu.matmul %4, %2, %cst_9 {dimension_numbers = #tpu.dot_dimension_numbers<[1], [0], [0], [1], [0, 0, 1, 1], [], []>} : vector<8x128xf32>, vector<128x128xf32>, vector<8x128xf32> -> vector<8x128xf32>
    %12 = vector.broadcast %10 : vector<8x1xf32> to vector<8x128xf32>
    %13 = arith.mulf %11, %12 : vector<8x128xf32>
    %14 = tpu.iota {dimensions = array<i32: 1>} : vector<8x128xi32>
    %c16_i32 = arith.constant 16 : i32
    %15 = vector.broadcast %c16_i32 : i32 to vector<8x128xi32>
    %16 = arith.cmpi slt, %14, %15 : vector<8x128xi32>
    %cst_10 = arith.constant -1.000000e+30 : f32
    %17 = vector.broadcast %cst_10 : f32 to vector<8x128xf32>
    %18 = arith.select %16, %13, %17 : vector<8x128xi1>, vector<8x128xf32>
    %cst_11 = arith.constant dense<0xFF800000> : vector<8xf32>
    %19 = vector.multi_reduction <maximumf>, %18, %cst_11 [1] : vector<8x128xf32> to vector<8xf32>
    %20 = vector.shape_cast %19 : vector<8xf32> to vector<8x1xf32>
    %21 = vector.broadcast %20 : vector<8x1xf32> to vector<8x128xf32>
    %22 = arith.subf %18, %21 : vector<8x128xf32>
    %23 = math.exp %22 : vector<8x128xf32>
    %cst_12 = arith.constant dense<0.000000e+00> : vector<8xf32>
    %24 = vector.multi_reduction <add>, %23, %cst_12 [1] : vector<8x128xf32> to vector<8xf32>
    %25 = vector.shape_cast %24 : vector<8xf32> to vector<8x1xf32>
    %cst_13 = arith.constant dense<0.000000e+00> : vector<8x128xf32>
    %26 = tpu.matmul %23, %3, %cst_13 {dimension_numbers = #tpu.dot_dimension_numbers<[1], [0], [0], [1], [0, 0, 1, 1], [], []>} : vector<8x128xf32>, vector<128x128xf32>, vector<8x128xf32> -> vector<8x128xf32>
    %27 = tpu.reciprocal %25 : vector<8x1xf32> -> vector<8x1xf32>
    %28 = vector.broadcast %27 : vector<8x1xf32> to vector<8x128xf32>
    %29 = arith.mulf %26, %28 : vector<8x128xf32>
    %cst_14 = arith.constant dense<0xFF800000> : vector<8xf32>
    %30 = vector.multi_reduction <maximumf>, %29, %cst_14 [1] : vector<8x128xf32> to vector<8xf32>
    %31 = vector.shape_cast %30 : vector<8xf32> to vector<8x1xf32>
    %32 = tpu.iota {dimensions = array<i32: 1>} : vector<8x128xi32>
    %33 = vector.broadcast %31 : vector<8x1xf32> to vector<8x128xf32>
    %34 = arith.cmpf oeq, %29, %33 : vector<8x128xf32>
    %c128_i32 = arith.constant 128 : i32
    %35 = vector.broadcast %c128_i32 : i32 to vector<8x128xi32>
    %36 = arith.select %34, %32, %35 : vector<8x128xi1>, vector<8x128xi32>
    %cst_15 = arith.constant dense<2147483647> : vector<8xi32>
    %37 = vector.multi_reduction <minsi>, %36, %cst_15 [1] : vector<8x128xi32> to vector<8xi32>
    %38 = vector.shape_cast %37 : vector<8xi32> to vector<8x1xi32>
    %39 = vector.shape_cast %31 : vector<8x1xf32> to vector<8x1xf32>
    %40 = vector.broadcast %39 : vector<8x1xf32> to vector<8x128xf32>
    %c0_16 = arith.constant 0 : index
    %c0_17 = arith.constant 0 : index
    %41 = vector.load %arg6[%c0_16, %c0_17] : memref<8x128xf32, #tpu.memory_space<vmem>>, vector<8x128xf32>
    tpu.vector_store %arg6[%c0_16, %c0_17], %40 {strides = array<i32>} : memref<8x128xf32, #tpu.memory_space<vmem>>, vector<8x128xf32>,
    %42 = vector.shape_cast %38 : vector<8x1xi32> to vector<8x1xi32>
    %43 = vector.broadcast %42 : vector<8x1xi32> to vector<8x128xi32>
    %c0_18 = arith.constant 0 : index
    %c0_19 = arith.constant 0 : index
    %44 = vector.load %arg5[%c0_18, %c0_19] : memref<8x128xi32, #tpu.memory_space<vmem>>, vector<8x128xi32>
    tpu.vector_store %arg5[%c0_18, %c0_19], %43 {strides = array<i32>} : memref<8x128xi32, #tpu.memory_space<vmem>>, vector<8x128xi32>,
    return
  }
  func.func @transform_0(%arg0: i32) -> (i32, i32) {
    %c0_i32 = arith.constant 0 : i32
    %c0_i32_0 = arith.constant 0 : i32
    return %arg0, %c0_i32 : i32, i32
  }
  func.func @transform_1(%arg0: i32) -> (i32, i32) {
    %c0_i32 = arith.constant 0 : i32
    %c0_i32_0 = arith.constant 0 : i32
    %c0_i32_1 = arith.constant 0 : i32
    return %c0_i32, %c0_i32_0 : i32, i32
  }
  func.func @transform_2(%arg0: i32) -> (i32, i32) {
    %c0_i32 = arith.constant 0 : i32
    %c0_i32_0 = arith.constant 0 : i32
    %c0_i32_1 = arith.constant 0 : i32
    return %c0_i32, %c0_i32_0 : i32, i32
  }
  func.func @transform_3(%arg0: i32) -> (i32, i32) {
    %c0_i32 = arith.constant 0 : i32
    %c0_i32_0 = arith.constant 0 : i32
    %c0_i32_1 = arith.constant 0 : i32
    return %c0_i32, %c0_i32_0 : i32, i32
  }
  func.func @transform_4(%arg0: i32) -> (i32, i32) {
    %c0_i32 = arith.constant 0 : i32
    %c0_i32_0 = arith.constant 0 : i32
    return %arg0, %c0_i32 : i32, i32
  }
  func.func @transform_5(%arg0: i32) -> (i32, i32) {
    %c0_i32 = arith.constant 0 : i32
    %c0_i32_0 = arith.constant 0 : i32
    return %arg0, %c0_i32 : i32, i32
  }
}

</mosaic_0001>

<llo_original>
// kernel: tpu_custom_call.1
$region0: #{tpu_custom_call.1}
  #allocation0 [shape = 'u32[]', space=smem, size = 0x4, offset = 0x4, fixed_abs, tag = 'smem constant byte address 0x4 - core index']
  #allocation1 [shape = 'u32[144,128]{1,0:T(1,128)}', space=vmem, size = 0x12000, scoped, tag = 'internal scratch']
  %s0 = inlined_call_operand.hbm [shape: f32[8,128], index: 0, kind: input, shape index: {}]
  %s1 = inlined_call_operand.hbm [shape: f32[128,128], index: 1, kind: input, shape index: {}]
  %s2 = inlined_call_operand.hbm [shape: f32[128,128], index: 2, kind: input, shape index: {}]
  %s3 = inlined_call_operand.hbm [shape: f32[128,128], index: 3, kind: input, shape index: {}]
  %s4 = inlined_call_operand.hbm [shape: s32[8,128], index: 4, kind: output, shape index: {0}]
  %s5 = inlined_call_operand.hbm [shape: f32[8,128], index: 5, kind: output, shape index: {1}]
  %6 = xla_tuple %s4, %s5
  %s7 = sld [smem:[#allocation0]]
  $region50: #{tpu_custom_call.1} parent=0
    _
  %s9 = ssub.s32 1, %s7
  %s10 = scalar_select 0, %s9, %s7
  $region1: #{tpu_custom_call.1} parent=0
    #allocation2 [shape = 'u8[4096]{0}', space=vmem, size = 0x1000, scoped, tag = 'input window, operand 0, single buffered']
    #allocation3 [shape = 's32[1]{0}', space=sflag, size = 0x4, scoped, tag = 'scoped memory for tpu_custom_call.1']
    #allocation4 [shape = 's32[1]{0}', space=sflag, size = 0x4, scoped, tag = 'scoped memory for tpu_custom_call.1']
    #allocation5 [shape = 'u8[65536]{0}', space=vmem, size = 0x10000, scoped, tag = 'input window, operand 1, single buffered']
    #allocation6 [shape = 's32[1]{0}', space=sflag, size = 0x4, scoped, tag = 'scoped memory for tpu_custom_call.1']
    #allocation7 [shape = 'u8[65536]{0}', space=vmem, size = 0x10000, scoped, tag = 'input window, operand 2, single buffered']
    #allocation8 [shape = 'u8[65536]{0}', space=vmem, size = 0x10000, scoped, tag = 'input window, operand 3, single buffered']
    #allocation9 [shape = 's32[1]{0}', space=sflag, size = 0x4, scoped, tag = 'scoped memory for tpu_custom_call.1']
    #allocation10 [shape = 'u8[4096]{0}', space=vmem, size = 0x1000, scoped, tag = 'output window, operand 0, single buffered']
    #allocation11 [shape = 'u8[4096]{0}', space=vmem, size = 0x1000, scoped, tag = 'output window, operand 1, single buffered']
    #allocation12 [shape = 's32[1]{0}', space=sflag, size = 0x4, scoped, tag = 'scoped memory for tpu_custom_call.1']
    %11 = vsyncpa [#allocation3], 0
    %12 = vsyncpa [#allocation6], 0
    %13 = vsyncpa [#allocation9], 0
    %14 = vsyncpa [#allocation4], 0
    %15 = vsyncpa [#allocation12], 0
    // Predicated region
    $region2: #{tpu_custom_call.1} parent=1 // pred_check
      _
    $region3: #{tpu_custom_call.1} parent=1 // pred_check_branch
      %17 = sbr.rel (0) target = $region5
    $region4: #{tpu_custom_call.1} parent=1 // pred_region
      %s19 = ssub.s32 128, 128
      %20 = vsyncadd [#allocation3], %s19
      %s22 = sshll.u32 [#allocation2], 4
      %s23 = int_to_ptr.vmem [resolvable:$true] %s22
      %25 = dma.hbm_to_vmem [thread:$0]  %s0, 128, %s23, [#allocation3]
    $region5: #{tpu_custom_call.1} parent=1 // pred_fallthru
      _
    // Predicated region
    $region6: #{tpu_custom_call.1} parent=1 // pred_check
      _
    $region7: #{tpu_custom_call.1} parent=1 // pred_check_branch
      %27 = sbr.rel (0) target = $region9
    $region8: #{tpu_custom_call.1} parent=1 // pred_region
      %s29 = ssub.s32 2048, 2048
      %30 = vsyncadd [#allocation6], %s29
      %s31 = sshll.u32 [#allocation5], 4
      %s32 = int_to_ptr.vmem [resolvable:$true] %s31
      %37 = dma.hbm_to_vmem [thread:$0]  %s1, 2048, %s32, [#allocation6], 128, 128, 8
    $region9: #{tpu_custom_call.1} parent=1 // pred_fallthru
      _
    // Predicated region
    $region10: #{tpu_custom_call.1} parent=1 // pred_check
      _
    $region11: #{tpu_custom_call.1} parent=1 // pred_check_branch
      %39 = sbr.rel (0) target = $region13
    $region12: #{tpu_custom_call.1} parent=1 // pred_region
      %s41 = ssub.s32 2048, 2048
      %42 = vsyncadd [#allocation6], %s41
      %s43 = sshll.u32 [#allocation7], 4
      %s44 = int_to_ptr.vmem [resolvable:$true] %s43
      %49 = dma.hbm_to_vmem [thread:$0]  %s2, 2048, %s44, [#allocation6], 128, 128, 8
    $region13: #{tpu_custom_call.1} parent=1 // pred_fallthru
      _
    // Predicated region
    $region14: #{tpu_custom_call.1} parent=1 // pred_check
      _
    $region15: #{tpu_custom_call.1} parent=1 // pred_check_branch
      %51 = sbr.rel (0) target = $region17
    $region16: #{tpu_custom_call.1} parent=1 // pred_region
      %s53 = ssub.s32 2048, 2048
      %54 = vsyncadd [#allocation9], %s53
      %s55 = sshll.u32 [#allocation8], 4
      %s56 = int_to_ptr.vmem [resolvable:$true] %s55
      %61 = dma.hbm_to_vmem [thread:$0]  %s3, 2048, %s56, [#allocation9], 128, 128, 8
    $region17: #{tpu_custom_call.1} parent=1 // pred_fallthru
      _
    // Predicated region
    $region18: #{tpu_custom_call.1} parent=1 // pred_check
      _
    $region19: #{tpu_custom_call.1} parent=1 // pred_check_branch
      %63 = sbr.rel (0) target = $region21
    $region20: #{tpu_custom_call.1} parent=1 // pred_region
      %64 = dma.done [#allocation3], 128
    $region21: #{tpu_custom_call.1} parent=1 // pred_fallthru
      _
    // Predicated region
    $region22: #{tpu_custom_call.1} parent=1 // pred_check
      _
    $region23: #{tpu_custom_call.1} parent=1 // pred_check_branch
      %66 = sbr.rel (0) target = $region25
    $region24: #{tpu_custom_call.1} parent=1 // pred_region
      %67 = dma.done [#allocation6], 2048
    $region25: #{tpu_custom_call.1} parent=1 // pred_fallthru
      _
    // Predicated region
    $region26: #{tpu_custom_call.1} parent=1 // pred_check
      _
    $region27: #{tpu_custom_call.1} parent=1 // pred_check_branch
      %69 = sbr.rel (0) target = $region29
    $region28: #{tpu_custom_call.1} parent=1 // pred_region
      %70 = dma.done [#allocation6], 2048
    $region29: #{tpu_custom_call.1} parent=1 // pred_fallthru
      _
    // Predicated region
    $region30: #{tpu_custom_call.1} parent=1 // pred_check
      _
    $region31: #{tpu_custom_call.1} parent=1 // pred_check_branch
      %72 = sbr.rel (0) target = $region33
    $region32: #{tpu_custom_call.1} parent=1 // pred_region
      %73 = dma.done [#allocation9], 2048
    $region33: #{tpu_custom_call.1} parent=1 // pred_fallthru
      _
    %v74 = vld [vmem:[#allocation2] sm:$0xff]
    %v75 = vld [vmem:[#allocation5] sm:$0xff]
    %v76 = vld [vmem:[#allocation5 + $0x8] sm:$0xff]
    %v77 = vld [vmem:[#allocation5 + $0x10] sm:$0xff]
    %v78 = vld [vmem:[#allocation5 + $0x18] sm:$0xff]
    %v79 = vld [vmem:[#allocation5 + $0x20] sm:$0xff]
    %v80 = vld [vmem:[#allocation5 + $0x28] sm:$0xff]
    %v81 = vld [vmem:[#allocation5 + $0x30] sm:$0xff]
    %v82 = vld [vmem:[#allocation5 + $0x38] sm:$0xff]
    %v83 = vld [vmem:[#allocation5 + $0x40] sm:$0xff]
    %v84 = vld [vmem:[#allocation5 + $0x48] sm:$0xff]
    %v85 = vld [vmem:[#allocation5 + $0x50] sm:$0xff]
    %v86 = vld [vmem:[#allocation5 + $0x58] sm:$0xff]
    %v87 = vld [vmem:[#allocation5 + $0x60] sm:$0xff]
    %v88 = vld [vmem:[#allocation5 + $0x68] sm:$0xff]
    %v89 = vld [vmem:[#allocation5 + $0x70] sm:$0xff]
    %v90 = vld [vmem:[#allocation5 + $0x78] sm:$0xff]
    %v91 = vld [vmem:[#allocation7] sm:$0xff]
    %v92 = vld [vmem:[#allocation7 + $0x8] sm:$0xff]
    %v93 = vld [vmem:[#allocation7 + $0x10] sm:$0xff]
    %v94 = vld [vmem:[#allocation7 + $0x18] sm:$0xff]
    %v95 = vld [vmem:[#allocation7 + $0x20] sm:$0xff]
    %v96 = vld [vmem:[#allocation7 + $0x28] sm:$0xff]
    %v97 = vld [vmem:[#allocation7 + $0x30] sm:$0xff]
    %v98 = vld [vmem:[#allocation7 + $0x38] sm:$0xff]
    %v99 = vld [vmem:[#allocation7 + $0x40] sm:$0xff]
    %v100 = vld [vmem:[#allocation7 + $0x48] sm:$0xff]
    %v101 = vld [vmem:[#allocation7 + $0x50] sm:$0xff]
    %v102 = vld [vmem:[#allocation7 + $0x58] sm:$0xff]
    %v103 = vld [vmem:[#allocation7 + $0x60] sm:$0xff]
    %v104 = vld [vmem:[#allocation7 + $0x68] sm:$0xff]
    %v105 = vld [vmem:[#allocation7 + $0x70] sm:$0xff]
    %v106 = vld [vmem:[#allocation7 + $0x78] sm:$0xff]
    %v107 = vld [vmem:[#allocation8] sm:$0xff]
    %v108 = vld [vmem:[#allocation8 + $0x8] sm:$0xff]
    %v109 = vld [vmem:[#allocation8 + $0x10] sm:$0xff]
    %v110 = vld [vmem:[#allocation8 + $0x18] sm:$0xff]
    %v111 = vld [vmem:[#allocation8 + $0x20] sm:$0xff]
    %v112 = vld [vmem:[#allocation8 + $0x28] sm:$0xff]
    %v113 = vld [vmem:[#allocation8 + $0x30] sm:$0xff]
    %v114 = vld [vmem:[#allocation8 + $0x38] sm:$0xff]
    %v115 = vld [vmem:[#allocation8 + $0x40] sm:$0xff]
    %v116 = vld [vmem:[#allocation8 + $0x48] sm:$0xff]
    %v117 = vld [vmem:[#allocation8 + $0x50] sm:$0xff]
    %v118 = vld [vmem:[#allocation8 + $0x58] sm:$0xff]
    %v119 = vld [vmem:[#allocation8 + $0x60] sm:$0xff]
    %v120 = vld [vmem:[#allocation8 + $0x68] sm:$0xff]
    %v121 = vld [vmem:[#allocation8 + $0x70] sm:$0xff]
    %v122 = vld [vmem:[#allocation8 + $0x78] sm:$0xff]
    %123 = vmatprep.subr.mxu0 0.0
    %124 = vmatpush1.msra.mxu0 %v75
    %125 = vmatprep.subr.mxu0 0.0
    %126 = vmatpush1.msra.mxu0 %v76
    %127 = vmatprep.subr.mxu0 0.0
    %128 = vmatpush1.msra.mxu0 %v77
    %129 = vmatprep.subr.mxu0 0.0
    %130 = vmatpush1.msra.mxu0 %v78
    %131 = vmatprep.subr.mxu0 0.0
    %132 = vmatpush1.msra.mxu0 %v79
    %133 = vmatprep.subr.mxu0 0.0
    %134 = vmatpush1.msra.mxu0 %v80
    %135 = vmatprep.subr.mxu0 0.0
    %136 = vmatpush1.msra.mxu0 %v81
    %137 = vmatprep.subr.mxu0 0.0
    %138 = vmatpush1.msra.mxu0 %v82
    %139 = vmatprep.subr.mxu0 0.0
    %140 = vmatpush1.msra.mxu0 %v83
    %141 = vmatprep.subr.mxu0 0.0
    %142 = vmatpush1.msra.mxu0 %v84
    %143 = vmatprep.subr.mxu0 0.0
    %144 = vmatpush1.msra.mxu0 %v85
    %145 = vmatprep.subr.mxu0 0.0
    %146 = vmatpush1.msra.mxu0 %v86
    %147 = vmatprep.subr.mxu0 0.0
    %148 = vmatpush1.msra.mxu0 %v87
    %149 = vmatprep.subr.mxu0 0.0
    %150 = vmatpush1.msra.mxu0 %v88
    %151 = vmatprep.subr.mxu0 0.0
    %152 = vmatpush1.msra.mxu0 %v89
    %153 = vmatprep.subr.mxu0 0.0
    %154 = vmatpush1.msra.mxu0 %v90
    %155 = vmatprep.subr.mxu0 0.0
    %156 = vmatpush1.msra.mxu0 0.0
    %157 = vmatprep.subr.mxu0 0.0
    %158 = vmatpush1.msra.mxu0 0.0
    %159 = vmatprep.subr.mxu0 0.0
    %160 = vmatpush1.msra.mxu0 0.0
    %161 = vmatprep.subr.mxu0 0.0
    %162 = vmatpush1.msra.mxu0 0.0
    %163 = vmatprep.subr.mxu0 0.0
    %164 = vmatpush1.msra.mxu0 0.0
    %165 = vmatprep.subr.mxu0 0.0
    %166 = vmatpush1.msra.mxu0 0.0
    %167 = vmatprep.subr.mxu0 0.0
    %168 = vmatpush1.msra.mxu0 0.0
    %169 = vmatprep.subr.mxu0 0.0
    %170 = vmatpush1.msra.mxu0 0.0
    %171 = vmatprep.subr.mxu0 0.0
    %172 = vmatpush1.msra.mxu0 0.0
    %173 = vmatprep.subr.mxu0 0.0
    %174 = vmatpush1.msra.mxu0 0.0
    %175 = vmatprep.subr.mxu0 0.0
    %176 = vmatpush1.msra.mxu0 0.0
    %177 = vmatprep.subr.mxu0 0.0
    %178 = vmatpush1.msra.mxu0 0.0
    %179 = vmatprep.subr.mxu0 0.0
    %180 = vmatpush1.msra.mxu0 0.0
    %181 = vmatprep.subr.mxu0 0.0
    %182 = vmatpush1.msra.mxu0 0.0
    %183 = vmatprep.subr.mxu0 0.0
    %184 = vmatpush1.msra.mxu0 0.0
    %185 = vmatprep.subr.mxu0 0.0
    %186 = vmatpush1.msra.mxu0 0.0
    %187 = vmatprep.mubr.f32.mxu0 0.0
    %188 = vmatmul.mubr.f32.gmra.mrb[0].mxu0 %v74
    %v189 = vpop.f32.mrb[0].mxu0
    %v190 = vadd.f32 0.0, %v189
    %v191 = vpop.f32.mrb[0].mxu0
    %192 = vdwg.mxu0
    %v193 = vmul.f32 %v190, %v190
    %194 = vadd.xlane.f32.xlu0 %v193
    %v195 = vpop.xlane.xlu0 %194
    %v196 = vmax.f32 %v195, 1e-30
    %v197 = vrsqrt.pop %v196
    %198 = vmatprep.subr.mxu0 0.0
    %199 = vmatpush1.msra.mxu0 %v91
    %200 = vmatprep.subr.mxu0 0.0
    %201 = vmatpush1.msra.mxu0 %v92
    %202 = vmatprep.subr.mxu0 0.0
    %203 = vmatpush1.msra.mxu0 %v93
    %204 = vmatprep.subr.mxu0 0.0
    %205 = vmatpush1.msra.mxu0 %v94
    %206 = vmatprep.subr.mxu0 0.0
    %207 = vmatpush1.msra.mxu0 %v95
    %208 = vmatprep.subr.mxu0 0.0
    %209 = vmatpush1.msra.mxu0 %v96
    %210 = vmatprep.subr.mxu0 0.0
    %211 = vmatpush1.msra.mxu0 %v97
    %212 = vmatprep.subr.mxu0 0.0
    %213 = vmatpush1.msra.mxu0 %v98
    %214 = vmatprep.subr.mxu0 0.0
    %215 = vmatpush1.msra.mxu0 %v99
    %216 = vmatprep.subr.mxu0 0.0
    %217 = vmatpush1.msra.mxu0 %v100
    %218 = vmatprep.subr.mxu0 0.0
    %219 = vmatpush1.msra.mxu0 %v101
    %220 = vmatprep.subr.mxu0 0.0
    %221 = vmatpush1.msra.mxu0 %v102
    %222 = vmatprep.subr.mxu0 0.0
    %223 = vmatpush1.msra.mxu0 %v103
    %224 = vmatprep.subr.mxu0 0.0
    %225 = vmatpush1.msra.mxu0 %v104
    %226 = vmatprep.subr.mxu0 0.0
    %227 = vmatpush1.msra.mxu0 %v105
    %228 = vmatprep.subr.mxu0 0.0
    %229 = vmatpush1.msra.mxu0 %v106
    %230 = vmatprep.subr.mxu0 0.0
    %231 = vmatpush1.msra.mxu0 0.0
    %232 = vmatprep.subr.mxu0 0.0
    %233 = vmatpush1.msra.mxu0 0.0
    %234 = vmatprep.subr.mxu0 0.0
    %235 = vmatpush1.msra.mxu0 0.0
    %236 = vmatprep.subr.mxu0 0.0
    %237 = vmatpush1.msra.mxu0 0.0
    %238 = vmatprep.subr.mxu0 0.0
    %239 = vmatpush1.msra.mxu0 0.0
    %240 = vmatprep.subr.mxu0 0.0
    %241 = vmatpush1.msra.mxu0 0.0
    %242 = vmatprep.subr.mxu0 0.0
    %243 = vmatpush1.msra.mxu0 0.0
    %244 = vmatprep.subr.mxu0 0.0
    %245 = vmatpush1.msra.mxu0 0.0
    %246 = vmatprep.subr.mxu0 0.0
    %247 = vmatpush1.msra.mxu0 0.0
    %248 = vmatprep.subr.mxu0 0.0
    %249 = vmatpush1.msra.mxu0 0.0
    %250 = vmatprep.subr.mxu0 0.0
    %251 = vmatpush1.msra.mxu0 0.0
    %252 = vmatprep.subr.mxu0 0.0
    %253 = vmatpush1.msra.mxu0 0.0
    %254 = vmatprep.subr.mxu0 0.0
    %255 = vmatpush1.msra.mxu0 0.0
    %256 = vmatprep.subr.mxu0 0.0
    %257 = vmatpush1.msra.mxu0 0.0
    %258 = vmatprep.subr.mxu0 0.0
    %259 = vmatpush1.msra.mxu0 0.0
    %260 = vmatprep.subr.mxu0 0.0
    %261 = vmatpush1.msra.mxu0 0.0
    %262 = vmatprep.mubr.f32.mxu0 0.0
    %263 = vmatmul.mubr.f32.gmra.mrb[0].mxu0 %v190
    %v264 = vpop.f32.mrb[0].mxu0
    %v265 = vadd.f32 0.0, %v264
    %v266 = vpop.f32.mrb[0].mxu0
    %267 = vdwg.mxu0
    %v268 = vmul.f32 %v265, %v197
    %v269 = vlaneseq
    %v270 = vand.u32 %v269, 127
    %vm271 = vcmp.lt.s32.totalorder %v270, 16
    %v272 = vsel %vm271, %v268, -1e+30
    %273 = vmax.xlane.f32.xlu0 %v272
    %v274 = vpop.xlane.xlu0 %273
    %v275 = vsub.f32 %v272, %v274
    %v276 = vmul.f32 %v275, 1.442695
    %v277 = vpow.pop %v276
    %278 = vadd.xlane.f32.xlu0 %v277
    %v279 = vpop.xlane.xlu0 %278
    %280 = vmatprep.subr.mxu0 0.0
    %281 = vmatpush1.msra.mxu0 %v107
    %282 = vmatprep.subr.mxu0 0.0
    %283 = vmatpush1.msra.mxu0 %v108
    %284 = vmatprep.subr.mxu0 0.0
    %285 = vmatpush1.msra.mxu0 %v109
    %286 = vmatprep.subr.mxu0 0.0
    %287 = vmatpush1.msra.mxu0 %v110
    %288 = vmatprep.subr.mxu0 0.0
    %289 = vmatpush1.msra.mxu0 %v111
    %290 = vmatprep.subr.mxu0 0.0
    %291 = vmatpush1.msra.mxu0 %v112
    %292 = vmatprep.subr.mxu0 0.0
    %293 = vmatpush1.msra.mxu0 %v113
    %294 = vmatprep.subr.mxu0 0.0
    %295 = vmatpush1.msra.mxu0 %v114
    %296 = vmatprep.subr.mxu0 0.0
    %297 = vmatpush1.msra.mxu0 %v115
    %298 = vmatprep.subr.mxu0 0.0
    %299 = vmatpush1.msra.mxu0 %v116
    %300 = vmatprep.subr.mxu0 0.0
    %301 = vmatpush1.msra.mxu0 %v117
    %302 = vmatprep.subr.mxu0 0.0
    %303 = vmatpush1.msra.mxu0 %v118
    %304 = vmatprep.subr.mxu0 0.0
    %305 = vmatpush1.msra.mxu0 %v119
    %306 = vmatprep.subr.mxu0 0.0
    %307 = vmatpush1.msra.mxu0 %v120
    %308 = vmatprep.subr.mxu0 0.0
    %309 = vmatpush1.msra.mxu0 %v121
    %310 = vmatprep.subr.mxu0 0.0
    %311 = vmatpush1.msra.mxu0 %v122
    %312 = vmatprep.subr.mxu0 0.0
    %313 = vmatpush1.msra.mxu0 0.0
    %314 = vmatprep.subr.mxu0 0.0
    %315 = vmatpush1.msra.mxu0 0.0
    %316 = vmatprep.subr.mxu0 0.0
    %317 = vmatpush1.msra.mxu0 0.0
    %318 = vmatprep.subr.mxu0 0.0
    %319 = vmatpush1.msra.mxu0 0.0
    %320 = vmatprep.subr.mxu0 0.0
    %321 = vmatpush1.msra.mxu0 0.0
    %322 = vmatprep.subr.mxu0 0.0
    %323 = vmatpush1.msra.mxu0 0.0
    %324 = vmatprep.subr.mxu0 0.0
    %325 = vmatpush1.msra.mxu0 0.0
    %326 = vmatprep.subr.mxu0 0.0
    %327 = vmatpush1.msra.mxu0 0.0
    %328 = vmatprep.subr.mxu0 0.0
    %329 = vmatpush1.msra.mxu0 0.0
    %330 = vmatprep.subr.mxu0 0.0
    %331 = vmatpush1.msra.mxu0 0.0
    %332 = vmatprep.subr.mxu0 0.0
    %333 = vmatpush1.msra.mxu0 0.0
    %334 = vmatprep.subr.mxu0 0.0
    %335 = vmatpush1.msra.mxu0 0.0
    %336 = vmatprep.subr.mxu0 0.0
    %337 = vmatpush1.msra.mxu0 0.0
    %338 = vmatprep.subr.mxu0 0.0
    %339 = vmatpush1.msra.mxu0 0.0
    %340 = vmatprep.subr.mxu0 0.0
    %341 = vmatpush1.msra.mxu0 0.0
    %342 = vmatprep.subr.mxu0 0.0
    %343 = vmatpush1.msra.mxu0 0.0
    %344 = vmatprep.mubr.f32.mxu0 0.0
    %345 = vmatmul.mubr.f32.gmra.mrb[0].mxu0 %v277
    %v346 = vpop.f32.mrb[0].mxu0
    %v347 = vadd.f32 0.0, %v346
    %v348 = vpop.f32.mrb[0].mxu0
    %349 = vdwg.mxu0
    %v350 = vrcp.pop %v279
    %v351 = vmul.f32 %v347, %v350
    %352 = vmax.xlane.f32.xlu0 %v351
    %v353 = vpop.xlane.xlu0 %352
    %vm354 = vcmp.eq.f32.partialorder %v351, %v353
    %v355 = vsel %vm354, %v270, 128
    %v356 = vand.u32 %v355, 65535
    %v357 = vshra.s32 %v355, 16
    %v358 = vcvt.s32.f32 %v356
    %v359 = vcvt.s32.f32 %v357
    %360 = vmin.xlane.f32.xlu0 %v359
    %v361 = vpop.xlane.xlu0 %360
    %vm362 = vcmp.eq.f32.partialorder %v359, %v361
    %v363 = vsel %vm362, %v358, inf
    %364 = vmin.xlane.f32.xlu0 %v363
    %v365 = vpop.xlane.xlu0 %364
    %v366 = vcvt.f32.s32 %v365
    %v367 = vcvt.f32.s32 %v361
    %v368 = vshll.u32 %v367, 16
    %v369 = vadd.s32 %v368, %v366
    %370 = vst [vmem:[#allocation11] sm:$0xff] %v353
    %371 = vst [vmem:[#allocation10] sm:$0xff] %v369
    // Predicated region
    $region34: #{tpu_custom_call.1} parent=1 // pred_check
      _
    $region35: #{tpu_custom_call.1} parent=1 // pred_check_branch
      %373 = sbr.rel (0) target = $region37
    $region36: #{tpu_custom_call.1} parent=1 // pred_region
      %s375 = ssub.s32 128, 128
      %376 = vsyncadd [#allocation4], %s375
      %s378 = sshll.u32 [#allocation10], 4
      %s379 = int_to_ptr.vmem [resolvable:$true] %s378
      %381 = dma.vmem_to_hbm [thread:$0]  %s379, 128, %s4, [#allocation4]
    $region37: #{tpu_custom_call.1} parent=1 // pred_fallthru
      _
    // Predicated region
    $region38: #{tpu_custom_call.1} parent=1 // pred_check
      _
    $region39: #{tpu_custom_call.1} parent=1 // pred_check_branch
      %383 = sbr.rel (0) target = $region41
    $region40: #{tpu_custom_call.1} parent=1 // pred_region
      %s385 = ssub.s32 128, 128
      %386 = vsyncadd [#allocation12], %s385
      %s388 = sshll.u32 [#allocation11], 4
      %s389 = int_to_ptr.vmem [resolvable:$true] %s388
      %391 = dma.vmem_to_hbm [thread:$0]  %s389, 128, %s5, [#allocation12]
    $region41: #{tpu_custom_call.1} parent=1 // pred_fallthru
      _
    // Predicated region
    $region42: #{tpu_custom_call.1} parent=1 // pred_check
      _
    $region43: #{tpu_custom_call.1} parent=1 // pred_check_branch
      %393 = sbr.rel (0) target = $region45
    $region44: #{tpu_custom_call.1} parent=1 // pred_region
      %394 = dma.done [#allocation4], 128
    $region45: #{tpu_custom_call.1} parent=1 // pred_fallthru
      _
    // Predicated region
    $region46: #{tpu_custom_call.1} parent=1 // pred_check
      _
    $region47: #{tpu_custom_call.1} parent=1 // pred_check_branch
      %396 = sbr.rel (0) target = $region49
    $region48: #{tpu_custom_call.1} parent=1 // pred_region
      %397 = dma.done [#allocation12], 128
    $region49: #{tpu_custom_call.1} parent=1 // pred_fallthru
      _
    %398 = vsyncpa [#allocation3], 1
    %399 = vsyncpa [#allocation6], 1
    %400 = vsyncpa [#allocation9], 1
    %401 = vsyncpa [#allocation4], 1
    %402 = vsyncpa [#allocation12], 1

</llo_original>
